<compile_context>
chip_gen: v6e
topology: v6e:2x2x1
jax: 0.10.0
libtpu: 0.0.40
codegen_flags: <defaults>
</compile_context>

<pallas_src>
import functools

import jax
import jax.numpy as jnp
from jax.experimental import pallas as pl
from jax.experimental.pallas import tpu as pltpu


def _round_up(x, m):
    return (x + m - 1) // m * m


def _contrastive_kernel(o1_ref, o2_ref, lab_ref, loss_ref, acc_ref, *,
                        margin, eps, total_rows, block_rows):
    i = pl.program_id(0)

    @pl.when(i == 0)
    def _init():
        acc_ref[0, 0] = jnp.float32(0.0)

    # Elementwise diff + lane reduction (hot path), computed in f32.
    diff = o1_ref[...].astype(jnp.float32) - o2_ref[...].astype(jnp.float32) + eps
    sq_dist = jnp.sum(diff * diff, axis=-1, keepdims=True)      # (TB, 1)
    pos = sq_dist                                               # d**2 == sq_dist
    d = jnp.sqrt(sq_dist)                                       # only for margin branch
    neg = jnp.maximum(margin - d, 0.0)
    neg = neg * neg
    lab = lab_ref[...].astype(jnp.float32)                      # (TB, 1)
    per_example = lab * pos + (1.0 - lab) * neg                 # (TB, 1)

    # Mask rows that were added as padding (ragged last tile).
    row_ids = jax.lax.broadcasted_iota(jnp.int32, per_example.shape, 0) + i * block_rows
    valid = (row_ids < total_rows).astype(jnp.float32)
    acc_ref[0, 0] += jnp.sum(per_example * valid)

    @pl.when(i == pl.num_programs(0) - 1)
    def _finalize():
        loss_ref[0, 0] = acc_ref[0, 0] / jnp.float32(total_rows)


# ~24 MiB double-buffered input budget: safe on v5e/v6e (128 MiB physical) and
# v7x (64 MiB physical, 32 MiB default scoped).
_VMEM_INPUT_BUDGET = 24 * 1024 * 1024


def contrastive_loss(output1, output2, label, margin=1.0, block_rows=512):
    """output1, output2: (B, D) float; label: (B,) float/int. Returns scalar f32."""
    B, D = output1.shape
    itemsize = output1.dtype.itemsize

    # Rows per tile: as large as the VMEM budget allows with 2 inputs x 2
    # pipeline buffers resident; multiple of 8 sublanes; at most the batch.
    rows_by_vmem = max(8, (_VMEM_INPUT_BUDGET // (4 * D * itemsize)) // 8 * 8)
    TB = int(min(block_rows, rows_by_vmem, _round_up(B, 8)))
    B_pad = _round_up(B, TB)

    if B_pad != B:
        pad = B_pad - B
        output1 = jnp.pad(output1, ((0, pad), (0, 0)))
        output2 = jnp.pad(output2, ((0, pad), (0, 0)))
        label = jnp.pad(label.reshape(B), ((0, pad),))
    label2d = label.reshape(B_pad, 1).astype(jnp.float32)

    steps = B_pad // TB
    kernel = functools.partial(
        _contrastive_kernel, margin=float(margin), eps=1e-6,
        total_rows=B, block_rows=TB)

    loss = pl.pallas_call(
        kernel,
        out_shape=jax.ShapeDtypeStruct((1, 1), jnp.float32),
        grid_spec=pltpu.PrefetchScalarGridSpec(
            num_scalar_prefetch=0,
            grid=(steps,),
            in_specs=[
                pl.BlockSpec((TB, D), lambda i: (i, 0)),
                pl.BlockSpec((TB, D), lambda i: (i, 0)),
                pl.BlockSpec((TB, 1), lambda i: (i, 0)),
            ],
            out_specs=pl.BlockSpec(memory_space=pltpu.SMEM),
            scratch_shapes=[pltpu.SMEM((1, 1), jnp.float32)],
        ),
        compiler_params=pltpu.CompilerParams(
            dimension_semantics=("arbitrary",),       # batch-reduction axis
            vmem_limit_bytes=32 * 1024 * 1024),       # raise v5e's 16 MiB default
    )(output1, output2, label2d)
    return loss[0, 0]


def _reference(output1, output2, label, margin=1.0):
    diff = output1 - output2 + 1e-6
    d = jnp.sqrt(jnp.sum(diff * diff, axis=-1))
    pos = d ** 2
    neg = jnp.clip(margin - d, 0.0, None) ** 2
    return jnp.mean(label * pos + (1.0 - label) * neg)


if __name__ == "__main__":
    key = jax.random.PRNGKey(0)
    k1, k2, k3 = jax.random.split(key, 3)

    # Small, but ragged (B not a multiple of the tile) and multi-tile
    # (block_rows=8 -> 2 grid steps) so accumulation + padding-mask paths run.
    B, D = 10, 32
    output1 = jax.random.normal(k1, (B, D), dtype=jnp.float32)
    output2 = jax.random.normal(k2, (B, D), dtype=jnp.float32)
    label = jax.random.bernoulli(k3, 0.5, (B,)).astype(jnp.float32)

    loss = contrastive_loss(output1, output2, label, margin=1.0, block_rows=8)
    loss = jax.block_until_ready(loss)
    ref = _reference(output1, output2, label, margin=1.0)
    assert jnp.allclose(loss, ref, rtol=1e-5, atol=1e-5), (loss, ref)

    # Also exercise the default single-tile path.
    loss2 = contrastive_loss(output1[:8], output2[:8], label[:8], margin=1.0)
    loss2 = jax.block_until_ready(loss2)
    ref2 = _reference(output1[:8], output2[:8], label[:8], margin=1.0)
    assert jnp.allclose(loss2, ref2, rtol=1e-5, atol=1e-5), (loss2, ref2)

    print("KERNEL_OK")
</pallas_src>

<mosaic_0001>
module attributes {stable_mosaic.version = 11 : i64} {
  func.func @_contrastive_kernel(%arg0: i32, %arg1: memref<8x32xf32, #tpu.memory_space<vmem>>, %arg2: memref<8x32xf32, #tpu.memory_space<vmem>>, %arg3: memref<8x1xf32, #tpu.memory_space<vmem>>, %arg4: memref<1x1xf32, #tpu.memory_space<smem>>, %arg5: memref<1x1xf32, #tpu.memory_space<smem>>) attributes {dimension_semantics = [#tpu.dimension_semantics<arbitrary>], iteration_bounds = array<i64: 2>, scalar_prefetch = 0 : i64, scratch_operands = 1 : i64, tpu.core_type = #tpu.core_type<tc>, window_params = [{transform_indices = @transform_0, window_bounds = array<i64: 8, 32>}, {transform_indices = @transform_1, window_bounds = array<i64: 8, 32>}, {transform_indices = @transform_2, window_bounds = array<i64: 8, 1>}, {transform_indices = @transform_3, window_bounds = array<i64: 1, 1>}]} {
    %c0_i32 = arith.constant 0 : i32
    %0 = arith.cmpi eq, %arg0, %c0_i32 : i32
    %1 = arith.extui %0 : i1 to i32
    %c0_i32_0 = arith.constant 0 : i32
    %2 = arith.cmpi ne, %1, %c0_i32_0 : i32
    scf.if %2 {
      %cst_16 = arith.constant 0.000000e+00 : f32
      %c0_17 = arith.constant 0 : index
      %c0_18 = arith.constant 0 : index
      %42 = memref.load %arg5[%c0_17, %c0_18] : memref<1x1xf32, #tpu.memory_space<smem>>
      memref.store %cst_16, %arg5[%c0_17, %c0_18] : memref<1x1xf32, #tpu.memory_space<smem>>
    } else {
    }
    %c0 = arith.constant 0 : index
    %c0_1 = arith.constant 0 : index
    %3 = vector.load %arg1[%c0, %c0_1] : memref<8x32xf32, #tpu.memory_space<vmem>>, vector<8x32xf32>
    %c0_2 = arith.constant 0 : index
    %c0_3 = arith.constant 0 : index
    %4 = vector.load %arg2[%c0_2, %c0_3] : memref<8x32xf32, #tpu.memory_space<vmem>>, vector<8x32xf32>
    %5 = arith.subf %3, %4 : vector<8x32xf32>
    %cst = arith.constant 9.99999997E-7 : f32
    %6 = vector.broadcast %cst : f32 to vector<8x32xf32>
    %7 = arith.addf %5, %6 : vector<8x32xf32>
    %8 = arith.mulf %7, %7 : vector<8x32xf32>
    %cst_4 = arith.constant dense<0.000000e+00> : vector<8xf32>
    %9 = vector.multi_reduction <add>, %8, %cst_4 [1] : vector<8x32xf32> to vector<8xf32>
    %10 = vector.shape_cast %9 : vector<8xf32> to vector<8x1xf32>
    %11 = math.sqrt %10 : vector<8x1xf32>
    %cst_5 = arith.constant 1.000000e+00 : f32
    %12 = vector.broadcast %cst_5 : f32 to vector<8x1xf32>
    %13 = arith.subf %12, %11 : vector<8x1xf32>
    %cst_6 = arith.constant 0.000000e+00 : f32
    %14 = vector.broadcast %cst_6 : f32 to vector<8x1xf32>
    %15 = arith.maximumf %13, %14 : vector<8x1xf32>
    %16 = arith.mulf %15, %15 : vector<8x1xf32>
    %c0_7 = arith.constant 0 : index
    %c0_8 = arith.constant 0 : index
    %17 = vector.load %arg3[%c0_7, %c0_8] : memref<8x1xf32, #tpu.memory_space<vmem>>, vector<8x1xf32>
    %18 = arith.mulf %17, %10 : vector<8x1xf32>
    %cst_9 = arith.constant 1.000000e+00 : f32
    %19 = vector.broadcast %cst_9 : f32 to vector<8x1xf32>
    %20 = arith.subf %19, %17 : vector<8x1xf32>
    %21 = arith.mulf %20, %16 : vector<8x1xf32>
    %22 = arith.addf %18, %21 : vector<8x1xf32>
    %23 = tpu.iota {dimensions = array<i32: 0>} : vector<8x1xi32>
    %c8_i32 = arith.constant 8 : i32
    %24 = arith.muli %arg0, %c8_i32 : i32
    %25 = vector.broadcast %24 : i32 to vector<8x1xi32>
    %26 = arith.addi %23, %25 : vector<8x1xi32>
    %c10_i32 = arith.constant 10 : i32
    %27 = vector.broadcast %c10_i32 : i32 to vector<8x1xi32>
    %28 = arith.cmpi slt, %26, %27 : vector<8x1xi32>
    %29 = arith.extui %28 : vector<8x1xi1> to vector<8x1xi32>
    %30 = arith.sitofp %29 : vector<8x1xi32> to vector<8x1xf32>
    %c0_10 = arith.constant 0 : index
    %c0_11 = arith.constant 0 : index
    %31 = memref.load %arg5[%c0_10, %c0_11] : memref<1x1xf32, #tpu.memory_space<smem>>
    %32 = arith.mulf %22, %30 : vector<8x1xf32>
    %33 = vector.shape_cast %32 : vector<8x1xf32> to vector<1x8x1xf32>
    %cst_12 = arith.constant dense<0.000000e+00> : vector<1xf32>
    %34 = vector.multi_reduction <add>, %33, %cst_12 [1, 2] : vector<1x8x1xf32> to vector<1xf32>
    %35 = vector.shape_cast %34 : vector<1xf32> to vector<1x1x1xf32>
    %36 = vector.extract %35[0, 0, 0] : f32 from vector<1x1x1xf32>
    %37 = arith.addf %31, %36 : f32
    %c0_13 = arith.constant 0 : index
    %c0_14 = arith.constant 0 : index
    %38 = memref.load %arg5[%c0_13, %c0_14] : memref<1x1xf32, #tpu.memory_space<smem>>
    memref.store %37, %arg5[%c0_13, %c0_14] : memref<1x1xf32, #tpu.memory_space<smem>>
    %c1_i32 = arith.constant 1 : i32
    %39 = arith.cmpi eq, %arg0, %c1_i32 : i32
    %40 = arith.extui %39 : i1 to i32
    %c0_i32_15 = arith.constant 0 : i32
    %41 = arith.cmpi ne, %40, %c0_i32_15 : i32
    scf.if %41 {
      %c0_16 = arith.constant 0 : index
      %c0_17 = arith.constant 0 : index
      %42 = memref.load %arg5[%c0_16, %c0_17] : memref<1x1xf32, #tpu.memory_space<smem>>
      %cst_18 = arith.constant 1.000000e+01 : f32
      %43 = arith.divf %42, %cst_18 : f32
      %c0_19 = arith.constant 0 : index
      %c0_20 = arith.constant 0 : index
      %44 = memref.load %arg4[%c0_19, %c0_20] : memref<1x1xf32, #tpu.memory_space<smem>>
      memref.store %43, %arg4[%c0_19, %c0_20] : memref<1x1xf32, #tpu.memory_space<smem>>
    } else {
    }
    return
  }
  func.func @transform_0(%arg0: i32) -> (i32, i32) {
    %c0_i32 = arith.constant 0 : i32
    %c0_i32_0 = arith.constant 0 : i32
    return %arg0, %c0_i32 : i32, i32
  }
  func.func @transform_1(%arg0: i32) -> (i32, i32) {
    %c0_i32 = arith.constant 0 : i32
    %c0_i32_0 = arith.constant 0 : i32
    return %arg0, %c0_i32 : i32, i32
  }
  func.func @transform_2(%arg0: i32) -> (i32, i32) {
    %c0_i32 = arith.constant 0 : i32
    %c0_i32_0 = arith.constant 0 : i32
    return %arg0, %c0_i32 : i32, i32
  }
  func.func @transform_3(%arg0: i32) -> (i32, i32) {
    %c0_i32 = arith.constant 0 : i32
    %c0_i32_0 = arith.constant 0 : i32
    %c0_i32_1 = arith.constant 0 : i32
    return %c0_i32, %c0_i32_0 : i32, i32
  }
}

</mosaic_0001>

<llo_original>
// kernel: tpu_custom_call.1
$region0: #{tpu_custom_call.1}
  #allocation0 [shape = 'u32[]', space=smem, size = 0x4, offset = 0x4, fixed_abs, tag = 'smem constant byte address 0x4 - core index']
  #allocation1 [shape = 'u32[144,128]{1,0:T(1,128)}', space=vmem, size = 0x12000, scoped, tag = 'internal scratch']
  #allocation2 [shape = 'f32[1,1]{1,0:T(1,128)}', space=smem, size = 0x200, scoped, tag = 'scratch operand']
  %s0 = inlined_call_operand.vmem [shape: f32[16,32], index: 0, kind: input, shape index: {}]
  %s1 = inlined_call_operand.hbm [shape: f32[16,32], index: 1, kind: input, shape index: {}]
  %s2 = inlined_call_operand.vmem [shape: f32[16,1], index: 2, kind: input, shape index: {}]
  %s3 = inlined_call_operand.hbm [shape: f32[1,1], index: 3, kind: output, shape index: {}]
  %s4 = sld [smem:[#allocation0]]
  $region57: #{tpu_custom_call.1} parent=0
    _
  %s6 = ssub.s32 1, %s4
  %s7 = scalar_select 0, %s6, %s4
  $region1: #{tpu_custom_call.1} parent=0
    #allocation3 [shape = 'u8[8192]{0}', space=vmem, size = 0x2000, scoped, tag = 'input window, operand 1']
    #allocation4 [shape = 's32[2]{0}', space=sflag, size = 0x8, scoped, tag = 'scoped memory for tpu_custom_call.1']
    #allocation5 [shape = 's32[2]{0}', space=sflag, size = 0x8, scoped, tag = 'scoped memory for tpu_custom_call.1']
    #allocation6 [shape = 'u8[512]{0}', space=smem, size = 0x200, scoped, tag = 'output window, operand 0, single buffered']
    %8 = vsyncpa [#allocation4], 0
    %s9 = scalar_lea.sflag [#allocation4], 1
    %10 = vsyncpa %s9, 0
    %11 = vsyncpa [#allocation5], 0
    loop: start=0, step=1, limit=4
    $region2: #{tpu_custom_call.1} parent=1 // loop_pre_header
      _
    $region3: #{tpu_custom_call.1} parent=1 // loop_header
      %s13 = sphi 0, %s17
      %p14 = scmp.ge.s32.totalorder %s13, 4
      %s23 = sphi 0, %s25
      %s26 = sphi 0, %s23
      %s27 = sphi 0, %s26
      %s43 = sphi 0, %s27
      %s49 = sphi 0, %s51
      %s52 = sphi 0, %s49
      %s53 = sphi 0, %s52
      %s69 = sphi 0, %s53
      %s75 = sphi 0, %s77
      %s78 = sphi 0, %s75
      %s79 = sphi 0, %s78
      %s95 = sphi 0, %s79
      %s99 = sphi 0, %s99
      %s101 = sphi 0, %s99
      %s102 = sphi 0, %s101
      %s116 = sphi 0, %s102
    $region4: #{tpu_custom_call.1} parent=1 // loop_header_branch
      %16 = sbr.rel (%p14) target = $region8
    $region5: #{tpu_custom_call.1} parent=1 // loop_body
      %s18 = ssub.s32 %s13, 1
      %s19 = ssub.s32 %s13, 2
      %s20 = sadd.s32 %s13, 1
      %s21 = ssub.s32 %s13, %s20
      %p22 = scmp.eq.s32.totalorder %s21, 0
      %s24 = sadd.s32 %s23, 1
      %s25 = scalar_select %p22, %s23, %s24
      %p28 = pneg %p22
      %p29 = scmp.eq.s32.totalorder %s13, 1
      %p30 = por %p28, %p29
      %p31 = scmp.ne.s32.totalorder %s23, %s26
      %p32 = scmp.eq.s32.totalorder %s13, 0
      %p33 = por %p31, %p32
      %p34 = scmp.ne.s32.totalorder %s23, %s26
      %p35 = scmp.eq.s32.totalorder %s18, 1
      %p36 = por %p34, %p35
      %p37 = scmp.ne.s32.totalorder %s26, %s27
      %p38 = scmp.eq.s32.totalorder %s18, 0
      %p39 = por %p37, %p38
      %p40 = scmp.ne.s32.totalorder %s26, %s27
      %p41 = scmp.eq.s32.totalorder %s19, 1
      %p42 = por %p40, %p41
      %p44 = scmp.ne.s32.totalorder %s27, %s43
      %p45 = scmp.eq.s32.totalorder %s19, 0
      %p46 = por %p44, %p45
      %s47 = ssub.s32 %s13, %s20
      %p48 = scmp.eq.s32.totalorder %s47, 0
      %s50 = sadd.s32 %s49, 1
      %s51 = scalar_select %p48, %s49, %s50
      %p54 = pneg %p48
      %p55 = scmp.eq.s32.totalorder %s13, 1
      %p56 = por %p54, %p55
      %p57 = scmp.ne.s32.totalorder %s49, %s52
      %p58 = scmp.eq.s32.totalorder %s13, 0
      %p59 = por %p57, %p58
      %p60 = scmp.ne.s32.totalorder %s49, %s52
      %p61 = scmp.eq.s32.totalorder %s18, 1
      %p62 = por %p60, %p61
      %p63 = scmp.ne.s32.totalorder %s52, %s53
      %p64 = scmp.eq.s32.totalorder %s18, 0
      %p65 = por %p63, %p64
      %p66 = scmp.ne.s32.totalorder %s52, %s53
      %p67 = scmp.eq.s32.totalorder %s19, 1
      %p68 = por %p66, %p67
      %p70 = scmp.ne.s32.totalorder %s53, %s69
      %p71 = scmp.eq.s32.totalorder %s19, 0
      %p72 = por %p70, %p71
      %s73 = ssub.s32 %s13, %s20
      %p74 = scmp.eq.s32.totalorder %s73, 0
      %s76 = sadd.s32 %s75, 1
      %s77 = scalar_select %p74, %s75, %s76
      %p80 = pneg %p74
      %p81 = scmp.eq.s32.totalorder %s13, 1
      %p82 = por %p80, %p81
      %p83 = scmp.ne.s32.totalorder %s75, %s78
      %p84 = scmp.eq.s32.totalorder %s13, 0
      %p85 = por %p83, %p84
      %p86 = scmp.ne.s32.totalorder %s75, %s78
      %p87 = scmp.eq.s32.totalorder %s18, 1
      %p88 = por %p86, %p87
      %p89 = scmp.ne.s32.totalorder %s78, %s79
      %p90 = scmp.eq.s32.totalorder %s18, 0
      %p91 = por %p89, %p90
      %p92 = scmp.ne.s32.totalorder %s78, %s79
      %p93 = scmp.eq.s32.totalorder %s19, 1
      %p94 = por %p92, %p93
      %p96 = scmp.ne.s32.totalorder %s79, %s95
      %p97 = scmp.eq.s32.totalorder %s19, 0
      %p98 = por %p96, %p97
      %s100 = sadd.s32 %s99, 1
      %p103 = scmp.eq.s32.totalorder %s13, 1
      %p104 = scmp.ne.s32.totalorder %s99, %s101
      %p105 = scmp.eq.s32.totalorder %s13, 0
      %p106 = por %p104, %p105
      %p107 = scmp.ne.s32.totalorder %s99, %s101
      %p108 = scmp.eq.s32.totalorder %s18, 1
      %p109 = por %p107, %p108
      %p110 = scmp.ne.s32.totalorder %s101, %s102
      %p111 = scmp.eq.s32.totalorder %s18, 0
      %p112 = por %p110, %p111
      %p113 = scmp.ne.s32.totalorder %s101, %s102
      %p114 = scmp.eq.s32.totalorder %s19, 1
      %p115 = por %p113, %p114
      %p117 = scmp.ne.s32.totalorder %s102, %s116
      %p118 = scmp.eq.s32.totalorder %s19, 0
      %p119 = por %p117, %p118
      %p120 = scmp.le.s32.totalorder 1, %s13
      %p121 = scmp.lt.s32.totalorder %s13, 3
      %p122 = pnand %p120, %p121
      %p123 = pneg %p122
      // Predicated region
      $region9: #{tpu_custom_call.1} parent=5 // pred_check
        _
      $region10: #{tpu_custom_call.1} parent=5 // pred_check_branch
        %125 = sbr.rel (%p122) target = $region12
      $region11: #{tpu_custom_call.1} parent=5 // pred_region
        %s126 = ssub.s32 %s13, 1
      $region12: #{tpu_custom_call.1} parent=5 // pred_fallthru
        _
      %p127 = scmp.lt.s32.totalorder %s13, 2
      // Predicated region
      $region13: #{tpu_custom_call.1} parent=5 // pred_check
        %p128 = pneg %p127
      $region14: #{tpu_custom_call.1} parent=5 // pred_check_branch
        %130 = sbr.rel (%p128) target = $region16
      $region15: #{tpu_custom_call.1} parent=5 // pred_region
        // Predicated region
        $region17: #{tpu_custom_call.1} parent=15 // pred_check
          %p131 = pneg %p33
        $region18: #{tpu_custom_call.1} parent=15 // pred_check_branch
          %133 = sbr.rel (%p131) target = $region20
        $region19: #{tpu_custom_call.1} parent=15 // pred_region
          %p134 = scmp.lt.s32.totalorder %s13, 1
          %s135 = scalar_select %p134, %s13, 1
          %s136 = smul.addr %s135, 8
          %s137 = scalar_lea.vmem %s0, %s136
        $region20: #{tpu_custom_call.1} parent=15 // pred_fallthru
          _
        // Predicated region
        $region21: #{tpu_custom_call.1} parent=15 // pred_check
          %p138 = pneg %p59
        $region22: #{tpu_custom_call.1} parent=15 // pred_check_branch
          %140 = sbr.rel (%p138) target = $region24
        $region23: #{tpu_custom_call.1} parent=15 // pred_region
          %s141 = sand.u32 %s49, 1
          %s142 = scalar_lea.sflag [#allocation4], %s141
          %s143 = sand.u32 %s49, 1
          %s144 = smul.addr %s143, 8
          %s145 = scalar_lea.vmem [#allocation3], %s144
          %s147 = ssub.s32 128, 128
          %148 = vsyncadd %s142, %s147
          %s149 = smul.addr %s13, 128
          %s150 = scalar_lea.hbm %s1, %s149
          %s152 = sshll.u32 %s145, 4
          %s153 = int_to_ptr.vmem [resolvable:$true] %s152
          %155 = dma.hbm_to_vmem [thread:$0]  %s150, 128, %s153, %s142
        $region24: #{tpu_custom_call.1} parent=15 // pred_fallthru
          _
        // Predicated region
        $region25: #{tpu_custom_call.1} parent=15 // pred_check
          %p156 = pneg %p85
        $region26: #{tpu_custom_call.1} parent=15 // pred_check_branch
          %158 = sbr.rel (%p156) target = $region28
        $region27: #{tpu_custom_call.1} parent=15 // pred_region
          %p159 = scmp.lt.s32.totalorder %s13, 1
          %s160 = scalar_select %p159, %s13, 1
          %s161 = smul.addr %s160, 8
          %s162 = scalar_lea.vmem %s2, %s161
        $region28: #{tpu_custom_call.1} parent=15 // pred_fallthru
          _
      $region16: #{tpu_custom_call.1} parent=5 // pred_fallthru
        _
      %p163 = scmp.le.s32.totalorder 1, %s13
      %p164 = scmp.lt.s32.totalorder %s13, 3
      %p165 = pnand %p163, %p164
      %p166 = pneg %p165
      // Predicated region
      $region29: #{tpu_custom_call.1} parent=5 // pred_check
        _
      $region30: #{tpu_custom_call.1} parent=5 // pred_check_branch
        %168 = sbr.rel (%p165) target = $region32
      $region31: #{tpu_custom_call.1} parent=5 // pred_region
        %s169 = ssub.s32 %s13, 1
        %s170 = sand.u32 %s52, 1
        %s171 = scalar_lea.sflag [#allocation4], %s170
        %s172 = sand.u32 %s52, 1
        %s173 = smul.addr %s172, 8
        %s174 = scalar_lea.vmem [#allocation3], %s173
        // Predicated region
        $region33: #{tpu_custom_call.1} parent=31 // pred_check
          %p175 = pneg %p65
        $region34: #{tpu_custom_call.1} parent=31 // pred_check_branch
          %177 = sbr.rel (%p175) target = $region36
        $region35: #{tpu_custom_call.1} parent=31 // pred_region
          %178 = dma.done %s171, 128
        $region36: #{tpu_custom_call.1} parent=31 // pred_fallthru
          _
        %p179 = scmp.lt.s32.totalorder %s18, 1
        %s180 = scalar_select %p179, %s18, 1
        %s181 = smul.addr %s180, 8
        %s182 = scalar_lea.vmem %s0, %s181
        %p183 = pneg %p39
        %p184 = pneg %p36
        %s185 = sand.u32 %s52, 1
        %s186 = scalar_lea.sflag [#allocation4], %s185
        %s187 = sand.u32 %s52, 1
        %s188 = smul.addr %s187, 8
        %s189 = scalar_lea.vmem [#allocation3], %s188
        %p190 = pneg %p65
        %p191 = pneg %p62
        %p192 = scmp.lt.s32.totalorder %s18, 1
        %s193 = scalar_select %p192, %s18, 1
        %s194 = smul.addr %s193, 8
        %s195 = scalar_lea.vmem %s2, %s194
        %p196 = pneg %p91
        %p197 = pneg %p88
        %p198 = pneg %p112
        %p199 = pneg %p109
        %p200 = scmp.lt.s32.totalorder %s18, 1
        %s201 = scalar_select %p200, %s18, 1
        %s202 = smul.addr %s201, 8
        %s203 = scalar_lea.vmem %s0, %s202
        %p204 = scmp.lt.s32.totalorder %s18, 1
        %s205 = scalar_select %p204, %s18, 1
        %s206 = smul.addr %s205, 8
        %s207 = scalar_lea.vmem %s2, %s206
        %p208 = scmp.eq.s32.totalorder %s18, 0
        // Predicated region
        $region37: #{tpu_custom_call.1} parent=31 // pred_check
          %p209 = pneg %p208
        $region38: #{tpu_custom_call.1} parent=31 // pred_check_branch
          %211 = sbr.rel (%p209) target = $region40
        $region39: #{tpu_custom_call.1} parent=31 // pred_region
          %s212 = scalar_lea.smem [#allocation2], 0
          %213 = sst [smem:[%s212]] 0.0
        $region40: #{tpu_custom_call.1} parent=31 // pred_fallthru
          _
        %v214 = vld [vmem:[%s203] sm:$0xff]
        %v215 = vld [vmem:[%s174] sm:$0xff]
        %v216 = vsub.f32 %v214, %v215
        %v217 = vadd.f32 %v216, 1e-06
        %v218 = vmul.f32 %v217, %v217
        %vm219 = vcmask 261120
        %v220 = vsel %vm219, %v218, 0.0
        %221 = vadd.xlane.f32.xlu0 %v220
        %v222 = vpop.xlane.xlu0 %221
        %v223 = vrsqrt.pop %v222
        %v224 = vmul.f32 %v222, %v223
        %vm225 = vcmp.eq.f32.partialorder %v222, inf
        %v226 = vsel %vm225, %v222, %v224
        %vm227 = vcmp.eq.f32.partialorder %v222, 0.0
        %v228 = vand.u32 %v222, 2147483648
        %v229 = vsel %vm227, %v228, %v226
        %v230 = vsub.f32 1.0, %v229
        %v231 = vmax.f32 %v230, 0.0
        %v232 = vmul.f32 %v231, %v231
        %v233 = vld [vmem:[%s207] sm:$0xff]
        %v234 = vmul.f32 %v233, %v222
        %v235 = vsub.f32 1.0, %v233
        %v236 = vmul.f32 %v235, %v232
        %v237 = vadd.f32 %v234, %v236
        %v238 = vlaneseq
        %v239 = vshrl.u32 %v238, 7
        %s240 = smul.u32 %s18, 8
        %v241 = vstv %s240
        %v242 = vadd.s32 %v239, %v241
        %vm243 = vcmp.lt.s32.totalorder %v242, 10
        %v244 = vsel %vm243, 1, 0
        %v245 = vcvt.s32.f32 %v244
        %s246 = sld [smem:[#allocation2]]
        %v247 = vmul.f32 %v237, %v245
        %vm248 = vcmask 7168
        %v249 = vsel %vm248, %v247, 0.0
        %250 = vadd.xlane.f32.xlu0 %v249
        %v251 = vpop.xlane.xlu0 %250
        %v252 = vrot.slane %v251, 4
        %v253 = vadd.f32 %v251, %v252
        %v254 = vrot.slane %v253, 2
        %v255 = vadd.f32 %v253, %v254
        %v256 = vrot.slane %v255, 1
        %v257 = vadd.f32 %v255, %v256
        %s258 = vtos %v257
        %s259 = sadd.f32 %s246, %s258
        %s260 = scalar_lea.smem [#allocation2], 0
        %261 = sst [smem:[%s260]] %s259
        %p262 = scmp.eq.s32.totalorder %s18, 1
        // Predicated region
        $region41: #{tpu_custom_call.1} parent=31 // pred_check
          %p263 = pneg %p262
        $region42: #{tpu_custom_call.1} parent=31 // pred_check_branch
          %265 = sbr.rel (%p263) target = $region44
        $region43: #{tpu_custom_call.1} parent=31 // pred_region
          %s266 = sld [smem:[#allocation2]]
          %v267 = vrcp.pop 10.0
          %s268 = vtos %v267
          %s269 = smul.f32 %s266, %s268
          %s270 = scalar_lea.smem [#allocation6], 0
          %271 = sst [smem:[%s270]] %s269
        $region44: #{tpu_custom_call.1} parent=31 // pred_fallthru
          _
        // Predicated region
        $region45: #{tpu_custom_call.1} parent=31 // pred_check
          %p272 = pneg %p109
        $region46: #{tpu_custom_call.1} parent=31 // pred_check_branch
          %274 = sbr.rel (%p272) target = $region48
        $region47: #{tpu_custom_call.1} parent=31 // pred_region
          %s276 = ssub.s32 16, 16
          %277 = vsyncadd [#allocation5], %s276
          %280 = dma.smem_to_hbm [#allocation6], 16, %s3, [#allocation5]
        $region48: #{tpu_custom_call.1} parent=31 // pred_fallthru
          _
        // Predicated region
        $region49: #{tpu_custom_call.1} parent=31 // pred_check
          %p281 = pneg %p109
        $region50: #{tpu_custom_call.1} parent=31 // pred_check_branch
          %283 = sbr.rel (%p281) target = $region52
        $region51: #{tpu_custom_call.1} parent=31 // pred_region
          %284 = dma.done [#allocation5], 16
        $region52: #{tpu_custom_call.1} parent=31 // pred_fallthru
          _
        %285 = sfence
      $region32: #{tpu_custom_call.1} parent=5 // pred_fallthru
        _
      %p286 = scmp.le.s32.totalorder 2, %s13
      // Predicated region
      $region53: #{tpu_custom_call.1} parent=5 // pred_check
        %p287 = pneg %p286
      $region54: #{tpu_custom_call.1} parent=5 // pred_check_branch
        %289 = sbr.rel (%p287) target = $region56
      $region55: #{tpu_custom_call.1} parent=5 // pred_region
        %s290 = ssub.s32 %s13, 2
      $region56: #{tpu_custom_call.1} parent=5 // pred_fallthru
        _
    $region6: #{tpu_custom_call.1} parent=1 // loop_footer
      %s17 = sadd.s32 1, %s13
    $region7: #{tpu_custom_call.1} parent=1 // loop_footer_branch
      %12 = sbr.rel target = $region3
    $region8: #{tpu_custom_call.1} parent=1 // loop_exit
      _
    %291 = vsyncpa [#allocation4], 1
    %s292 = scalar_lea.sflag [#allocation4], 1
    %293 = vsyncpa %s292, 1
    %294 = vsyncpa [#allocation5], 1
    %s295 = scalar_lea.sflag [#allocation5], 1
    %296 = vsyncpa %s295, 1

</llo_original>
